<compile_context>
chip_gen: v5e
topology: v5e:2x2
jax: 0.10.0
libtpu: 0.0.40
codegen_flags: <defaults>
</compile_context>

<pallas_src>
import jax
import jax.numpy as jnp
from jax import lax
from jax.experimental import pallas as pl
from jax.experimental.pallas import tpu as pltpu

IN_FEATURES = 32
OUT_FEATURES = 10

# Fold 4 batch rows into the lane dimension: 4*32 = 128 input lanes (exactly one
# vreg lane width) and 4*10 = 40 output lanes.
_FOLD = 4
_K_FOLD = _FOLD * IN_FEATURES    # 128
_N_FOLD = _FOLD * OUT_FEATURES   # 40

# Physical (lane-padded) VMEM per folded row-group g:
#   x   : (g, 128) f32                        -> g * 512 B  (lane dense)
#   out : (g, 40)  f32, padded to 128 lanes   -> g * 512 B
# No-grid path up to 16K groups (64K rows) ~= 16 MiB, inside the 32 MiB limit.
_NO_GRID_MAX_ROWS = 65536

# Grid-path tile: 8192 row-groups = 32768 rows per step.
# Double-buffered x + out = 4*8192*512 B = 16 MiB physical; x DMA per step = 4 MiB.
_GROUP_TILE = 8192

# Fallback tile (batch not a multiple of 4): plain (rows, 32) blocks.
_BATCH_TILE = 8192

_VMEM_LIMIT = 32 * 1024 * 1024


def _folded_kernel(x_ref, w_ref, o_ref):
    # x_ref: (g, 128), w_ref: (128, 40) block-diagonal of W.T, o_ref: (g, 40)
    o_ref[...] = jnp.dot(
        x_ref[...], w_ref[...], preferred_element_type=jnp.float32
    ).astype(o_ref.dtype)


def _plain_kernel(x_ref, w_ref, o_ref):
    # x_ref: (rows, 32), w_ref: (10, 32) PyTorch layout; contract K directly
    # on the MXU (no transpose materialized anywhere).
    o_ref[...] = lax.dot_general(
        x_ref[...],
        w_ref[...],
        dimension_numbers=(((1,), (1,)), ((), ())),
        preferred_element_type=jnp.float32,
    ).astype(o_ref.dtype)


def _block_diag_weight(weight):
    # (10, 32) PyTorch layout -> (128, 40): four copies of W.T on the diagonal.
    eye = jnp.eye(_FOLD, dtype=weight.dtype)
    return jnp.kron(eye, weight.T)


def submodule_forward(x, weight, *,
                      no_grid_max_rows=_NO_GRID_MAX_ROWS,
                      group_tile=_GROUP_TILE):
    """Pallas implementation of SubModule(nn.Linear(32, 10, bias=False)).forward.

    x:      (B, IN_FEATURES) float32
    weight: (OUT_FEATURES, IN_FEATURES) float32 (PyTorch layout, NOT transposed)
    returns (B, OUT_FEATURES) float32
    """
    assert x.ndim == 2 and x.shape[1] == IN_FEATURES
    assert weight.shape == (OUT_FEATURES, IN_FEATURES)
    b = x.shape[0]

    vmem_specs = [
        pl.BlockSpec(memory_space=pltpu.MemorySpace.VMEM),
        pl.BlockSpec(memory_space=pltpu.MemorySpace.VMEM),
    ]
    vmem_out = pl.BlockSpec(memory_space=pltpu.MemorySpace.VMEM)
    no_grid_params = pltpu.CompilerParams(vmem_limit_bytes=_VMEM_LIMIT)

    if b % _FOLD != 0:
        # Rare fallback: batch not a multiple of 4, keep PyTorch layouts unfolded.
        if b <= no_grid_max_rows:
            return pl.pallas_call(
                _plain_kernel,
                out_shape=jax.ShapeDtypeStruct((b, OUT_FEATURES), x.dtype),
                in_specs=vmem_specs,
                out_specs=vmem_out,
                compiler_params=no_grid_params,
            )(x, weight)
        return pl.pallas_call(
            _plain_kernel,
            out_shape=jax.ShapeDtypeStruct((b, OUT_FEATURES), x.dtype),
            grid=(pl.cdiv(b, _BATCH_TILE),),
            in_specs=[
                pl.BlockSpec((_BATCH_TILE, IN_FEATURES), lambda i: (i, 0)),
                pl.BlockSpec((OUT_FEATURES, IN_FEATURES), lambda i: (0, 0)),
            ],
            out_specs=pl.BlockSpec((_BATCH_TILE, OUT_FEATURES), lambda i: (i, 0)),
            compiler_params=pltpu.CompilerParams(
                dimension_semantics=("parallel",),
                vmem_limit_bytes=_VMEM_LIMIT,
            ),
        )(x, weight)

    groups = b // _FOLD
    x_folded = x.reshape(groups, _K_FOLD)      # contiguous reshape -> free
    w_folded = _block_diag_weight(weight)      # (128, 40), tiny, built once

    if b <= no_grid_max_rows:
        # Whole problem in one VMEM-resident block: one MXU dot, one contiguous
        # DMA each way, zero grid/pipeline bookkeeping.
        y_folded = pl.pallas_call(
            _folded_kernel,
            out_shape=jax.ShapeDtypeStruct((groups, _N_FOLD), x.dtype),
            in_specs=vmem_specs,
            out_specs=vmem_out,
            compiler_params=no_grid_params,
        )(x_folded, w_folded)
    else:
        # Large batch: tile row-groups; the tiny weight block stays resident.
        y_folded = pl.pallas_call(
            _folded_kernel,
            out_shape=jax.ShapeDtypeStruct((groups, _N_FOLD), x.dtype),
            grid=(pl.cdiv(groups, group_tile),),
            in_specs=[
                pl.BlockSpec((group_tile, _K_FOLD), lambda i: (i, 0)),
                pl.BlockSpec((_K_FOLD, _N_FOLD), lambda i: (0, 0)),
            ],
            out_specs=pl.BlockSpec((group_tile, _N_FOLD), lambda i: (i, 0)),
            compiler_params=pltpu.CompilerParams(
                dimension_semantics=("parallel",),
                vmem_limit_bytes=_VMEM_LIMIT,
            ),
        )(x_folded, w_folded)

    return y_folded.reshape(b, OUT_FEATURES)   # contiguous reshape -> free


if __name__ == "__main__":
    key = jax.random.PRNGKey(0)
    k_w, k_x0, k_x1, k_x2 = jax.random.split(key, 4)

    # Deterministic "nn.Linear" weight init (kaiming-uniform-ish bound).
    bound = 1.0 / (IN_FEATURES ** 0.5)
    weight = jax.random.uniform(
        k_w, (OUT_FEATURES, IN_FEATURES), dtype=jnp.float32,
        minval=-bound, maxval=bound,
    )

    def reference(x):
        return jnp.matmul(x, weight.T, precision=lax.Precision.HIGHEST)

    # 1) The shape the original test exercises: small batch, folded no-grid path.
    x_small = jax.random.normal(k_x0, (8, IN_FEATURES), dtype=jnp.float32)
    y_small = jax.block_until_ready(submodule_forward(x_small, weight))
    assert y_small.shape == (8, OUT_FEATURES)
    assert jnp.allclose(y_small, reference(x_small), atol=1e-2, rtol=1e-2)

    # 2) Non-multiple-of-4 batch: plain fallback path.
    x_odd = jax.random.normal(k_x1, (6, IN_FEATURES), dtype=jnp.float32)
    y_odd = jax.block_until_ready(submodule_forward(x_odd, weight))
    assert y_odd.shape == (6, OUT_FEATURES)
    assert jnp.allclose(y_odd, reference(x_odd), atol=1e-2, rtol=1e-2)

    # 3) Exercise the tiled grid path at a small size by lowering the cutoff/tile.
    x_med = jax.random.normal(k_x2, (1024, IN_FEATURES), dtype=jnp.float32)
    y_med = jax.block_until_ready(
        submodule_forward(x_med, weight, no_grid_max_rows=256, group_tile=64)
    )
    assert y_med.shape == (1024, OUT_FEATURES)
    assert jnp.allclose(y_med, reference(x_med), atol=1e-2, rtol=1e-2)

    print("KERNEL_OK")
</pallas_src>

<mosaic_0001>
module attributes {stable_mosaic.version = 11 : i64} {
  func.func @_folded_kernel(%arg0: memref<2x128xf32, #tpu.memory_space<vmem>>, %arg1: memref<128x40xf32, #tpu.memory_space<vmem>>, %arg2: memref<2x40xf32, #tpu.memory_space<vmem>>) attributes {dimension_semantics = [], scalar_prefetch = 0 : i64, scratch_operands = 0 : i64, tpu.core_type = #tpu.core_type<tc>} {
    %c0 = arith.constant 0 : index
    %c0_0 = arith.constant 0 : index
    %0 = vector.load %arg0[%c0, %c0_0] : memref<2x128xf32, #tpu.memory_space<vmem>>, vector<2x128xf32>
    %c0_1 = arith.constant 0 : index
    %c0_2 = arith.constant 0 : index
    %1 = vector.load %arg1[%c0_1, %c0_2] : memref<128x40xf32, #tpu.memory_space<vmem>>, vector<128x40xf32>
    %cst = arith.constant dense<0.000000e+00> : vector<2x40xf32>
    %2 = tpu.matmul %0, %1, %cst {dimension_numbers = #tpu.dot_dimension_numbers<[1], [0], [0], [1], [0, 0, 1, 1], [], []>} : vector<2x128xf32>, vector<128x40xf32>, vector<2x40xf32> -> vector<2x40xf32>
    %c0_3 = arith.constant 0 : index
    %c0_4 = arith.constant 0 : index
    %3 = vector.load %arg2[%c0_3, %c0_4] : memref<2x40xf32, #tpu.memory_space<vmem>>, vector<2x40xf32>
    tpu.vector_store %arg2[%c0_3, %c0_4], %2 {strides = array<i32>} : memref<2x40xf32, #tpu.memory_space<vmem>>, vector<2x40xf32>,
    return
  }
}

</mosaic_0001>

<llo_original>
// kernel: tpu_custom_call.1
$region0: #{tpu_custom_call.1}
  #allocation0 [shape = 'u32[]', space=smem, size = 0x4, offset = 0x4, fixed_abs, tag = 'smem constant byte address 0x4 - core index']
  #allocation1 [shape = 'u32[72,128]{1,0:T(1,128)}', space=vmem, size = 0x9000, scoped, tag = 'internal scratch']
  %s0 = inlined_call_operand.vmem [shape: f32[2,128], index: 0, kind: input, shape index: {}]
  %s1 = inlined_call_operand.vmem [shape: f32[128,40], index: 1, kind: input, shape index: {}]
  %s2 = inlined_call_operand.hbm [shape: f32[2,40], index: 2, kind: output, shape index: {}]
  %s3 = sld [smem:[#allocation0]]
  $region18: #{tpu_custom_call.1} parent=0
    _
  %s5 = ssub.s32 1, %s3
  %s6 = scalar_select 0, %s5, %s3
  $region1: #{tpu_custom_call.1} parent=0
    #allocation2 [shape = 'u8[1024]{0}', space=vmem, size = 0x400, scoped, tag = 'output window, operand 0, single buffered']
    #allocation3 [shape = 's32[1]{0}', space=sflag, size = 0x4, scoped, tag = 'scoped memory for tpu_custom_call.1']
    %7 = vsyncpa [#allocation3], 0
    // Predicated region
    $region2: #{tpu_custom_call.1} parent=1 // pred_check
      _
    $region3: #{tpu_custom_call.1} parent=1 // pred_check_branch
      %9 = sbr.rel (0) target = $region5
    $region4: #{tpu_custom_call.1} parent=1 // pred_region
      _
    $region5: #{tpu_custom_call.1} parent=1 // pred_fallthru
      _
    // Predicated region
    $region6: #{tpu_custom_call.1} parent=1 // pred_check
      _
    $region7: #{tpu_custom_call.1} parent=1 // pred_check_branch
      %11 = sbr.rel (0) target = $region9
    $region8: #{tpu_custom_call.1} parent=1 // pred_region
      _
    $region9: #{tpu_custom_call.1} parent=1 // pred_fallthru
      _
    %v12 = vld [vmem:[%s0] sm:$0x3]
    %v13 = vld [vmem:[%s1] sm:$0xff]
    %v14 = vld [vmem:[%s1 + $0x8] sm:$0xff]
    %v15 = vld [vmem:[%s1 + $0x10] sm:$0xff]
    %v16 = vld [vmem:[%s1 + $0x18] sm:$0xff]
    %v17 = vld [vmem:[%s1 + $0x20] sm:$0xff]
    %v18 = vld [vmem:[%s1 + $0x28] sm:$0xff]
    %v19 = vld [vmem:[%s1 + $0x30] sm:$0xff]
    %v20 = vld [vmem:[%s1 + $0x38] sm:$0xff]
    %v21 = vld [vmem:[%s1 + $0x40] sm:$0xff]
    %v22 = vld [vmem:[%s1 + $0x48] sm:$0xff]
    %v23 = vld [vmem:[%s1 + $0x50] sm:$0xff]
    %v24 = vld [vmem:[%s1 + $0x58] sm:$0xff]
    %v25 = vld [vmem:[%s1 + $0x60] sm:$0xff]
    %v26 = vld [vmem:[%s1 + $0x68] sm:$0xff]
    %v27 = vld [vmem:[%s1 + $0x70] sm:$0xff]
    %v28 = vld [vmem:[%s1 + $0x78] sm:$0xff]
    %29 = vmatpush.msra.mxu0 %v28
    %30 = vmatpush.msra.mxu0 %v27
    %31 = vmatpush.msra.mxu0 %v26
    %32 = vmatpush.msra.mxu0 %v25
    %33 = vmatpush.msra.mxu0 %v24
    %34 = vmatpush.msra.mxu0 %v23
    %35 = vmatpush.msra.mxu0 %v22
    %36 = vmatpush.msra.mxu0 %v21
    %37 = vmatpush.msra.mxu0 %v20
    %38 = vmatpush.msra.mxu0 %v19
    %39 = vmatpush.msra.mxu0 %v18
    %40 = vmatpush.msra.mxu0 %v17
    %41 = vmatpush.msra.mxu0 %v16
    %42 = vmatpush.msra.mxu0 %v15
    %43 = vmatpush.msra.mxu0 %v14
    %44 = vmatpush.msra.mxu0 %v13
    %45 = vmatmul.f32.gmra.mxu0 %v12
    %v46 = vpop.f32.mrf.mxu0
    %v47 = vadd.f32 0.0, %v46
    %48 = vdwg.mxu0
    %vm49 = vcmask 320512
    %50 = vst.msk [vmem:[#allocation2] sm:$0x3] %vm49, %v47
    // Predicated region
    $region10: #{tpu_custom_call.1} parent=1 // pred_check
      _
    $region11: #{tpu_custom_call.1} parent=1 // pred_check_branch
      %52 = sbr.rel (0) target = $region13
    $region12: #{tpu_custom_call.1} parent=1 // pred_region
      %54 = vsyncadd [#allocation3], 0
      %s56 = sshll.u32 [#allocation2], 4
      %s57 = int_to_ptr.vmem [resolvable:$true] %s56
      %s58 = sshll.u32 %s2, 4
      %s59 = int_to_ptr.hbm [resolvable:$true] %s58
      %61 = dma.vmem_to_hbm [thread:$0]  %s57, 32, %s59, [#allocation3]
    $region13: #{tpu_custom_call.1} parent=1 // pred_fallthru
      _
    // Predicated region
    $region14: #{tpu_custom_call.1} parent=1 // pred_check
      _
    $region15: #{tpu_custom_call.1} parent=1 // pred_check_branch
      %63 = sbr.rel (0) target = $region17
    $region16: #{tpu_custom_call.1} parent=1 // pred_region
      %65 = dma.done [#allocation3], 32
    $region17: #{tpu_custom_call.1} parent=1 // pred_fallthru
      _
    %66 = vsyncpa [#allocation3], 1

</llo_original>
